<compile_context>
chip_gen: v5e
topology: v5e:2x2
jax: 0.10.0
libtpu: 0.0.40
codegen_flags: <defaults>
</compile_context>

<pallas_src>
import jax
import jax.numpy as jnp
from jax.experimental import pallas as pl
from jax.experimental.pallas import tpu as pltpu


def _linear_select_kernel(idx_ref, x_ref, w_ref, b_ref, o_ref, acc_ref):
    # x_ref: (tm, tk); w_ref: (tk, tn) (layer dim squeezed); b_ref: (1, tn)
    # acc_ref: f32 (tm, tn) VMEM scratch, resident across the K grid axis.
    del idx_ref  # only used by the index_maps
    k = pl.program_id(2)

    @pl.when(k == 0)
    def _():
        acc_ref[...] = jnp.zeros_like(acc_ref)

    acc_ref[...] += jnp.dot(x_ref[...], w_ref[...],
                            preferred_element_type=jnp.float32)

    @pl.when(k == pl.num_programs(2) - 1)
    def _():
        o_ref[...] = (acc_ref[...] + b_ref[...].astype(jnp.float32)
                      ).astype(o_ref.dtype)


def _largest_divisor(dim, candidates):
    for c in candidates:
        if c <= dim and dim % c == 0:
            return c
    return dim


def projection_linear(hidden_state, weights_t, biases, idx, compute_dtype=None):
    """y = hidden_state @ weights_t[idx] + biases[idx]  (BasicLinear, act=False).

    hidden_state: [..., K]; weights_t: [L, K, N] (nn.Linear weight transposed);
    biases: [L, 1, N]; idx: int / scalar int32.  compute_dtype (e.g. bfloat16)
    optionally casts x / W for the MXU matmul; accumulation is always f32.
    """
    orig_shape = hidden_state.shape
    K = orig_shape[-1]
    L, K_w, N = weights_t.shape
    assert K == K_w
    out_dtype = hidden_state.dtype

    x = hidden_state.reshape(-1, K)
    M = x.shape[0]

    # Clamp runtime layer index so a bad idx can never issue an OOB HBM DMA.
    idx_arr = jnp.clip(jnp.asarray(idx, dtype=jnp.int32), 0, L - 1).reshape((1,))

    if compute_dtype is not None:
        x = x.astype(compute_dtype)
        weights_t = weights_t.astype(compute_dtype)

    # ---- plain-XLA fast path: non-lane-alignable or tiny problems where the
    # pallas_call fixed cost (dispatch + per-step overhead) dominates. ----
    aligned = (K % 128 == 0) and (N % 128 == 0) and (M % 8 == 0)
    tiny = (M * K * N) < (1 << 16)
    if not aligned or tiny:
        w = jax.lax.dynamic_index_in_dim(weights_t, idx_arr[0], axis=0,
                                         keepdims=False)
        b = jax.lax.dynamic_index_in_dim(biases, idx_arr[0], axis=0,
                                         keepdims=False)[0]
        y = jnp.dot(x, w, preferred_element_type=jnp.float32)
        y = (y + b.astype(jnp.float32)).astype(out_dtype)
        return y.reshape(orig_shape[:-1] + (N,))

    # ---- tiled Pallas path ----
    sublane = 16 if x.dtype == jnp.bfloat16 else 8
    m_candidates = (256, 128, 64, 32, 16) if sublane == 16 else (256, 128, 64, 32, 16, 8)
    tm = _largest_divisor(M, m_candidates)
    if tm % sublane:              # no suitable divisor -> single full-M tile
        tm = M
    tk = _largest_divisor(K, (512, 256, 128))
    tn = _largest_divisor(N, (512, 256, 128))

    grid = (M // tm, N // tn, K // tk)

    out = pl.pallas_call(
        _linear_select_kernel,
        out_shape=jax.ShapeDtypeStruct((M, N), out_dtype),
        grid_spec=pltpu.PrefetchScalarGridSpec(
            num_scalar_prefetch=1,
            grid=grid,
            in_specs=[
                pl.BlockSpec((tm, tk), lambda i, j, k, idx_r: (i, k)),
                pl.BlockSpec((pl.Squeezed(), tk, tn),
                             lambda i, j, k, idx_r: (idx_r[0], k, j)),
                pl.BlockSpec((pl.Squeezed(), 1, tn),
                             lambda i, j, k, idx_r: (idx_r[0], 0, j)),
            ],
            out_specs=pl.BlockSpec((tm, tn), lambda i, j, k, idx_r: (i, j)),
            scratch_shapes=[pltpu.VMEM((tm, tn), jnp.float32)],
        ),
        compiler_params=pltpu.CompilerParams(
            dimension_semantics=("parallel", "parallel", "arbitrary")),
    )(idx_arr, x, weights_t, biases)

    return out.reshape(orig_shape[:-1] + (N,))


def init_params(key, layers, input_size, output_size, dtype=jnp.float32):
    """Deterministic synthetic init matching nn.Linear shapes.

    PyTorch nn.Linear weight is [out, in]; stored transposed as [in, out]."""
    keys = jax.random.split(key, 2 * layers)
    bound = 1.0 / jnp.sqrt(input_size)
    w_list, b_list = [], []
    for l in range(layers):
        w = jax.random.uniform(keys[2 * l], (input_size, output_size),
                               minval=-bound, maxval=bound, dtype=dtype)
        b = jax.random.uniform(keys[2 * l + 1], (1, output_size),
                               minval=-bound, maxval=bound, dtype=dtype)
        w_list.append(w)
        b_list.append(b)
    return jnp.stack(w_list, axis=0), jnp.stack(b_list, axis=0)


if __name__ == "__main__":
    # Lane-dense shapes (K, N multiples of 128) so the tiled Pallas path runs;
    # K=1024 > tk=512 also exercises the K-axis accumulator init/finalize.
    batch, seq, input_size, output_size, layers = 2, 8, 1024, 256, 3

    key = jax.random.PRNGKey(0)
    k_x, k_p = jax.random.split(key)
    hidden_state = jax.random.normal(k_x, (batch, seq, input_size), dtype=jnp.float32)
    weights_t, biases = init_params(k_p, layers, input_size, output_size)

    idx = 1  # which BasicLinear in the ModuleList to apply

    # High-precision reference: y = x @ W[idx] + b[idx]  (BasicLinear, act=False)
    ref = jnp.dot(hidden_state, weights_t[idx],
                  precision=jax.lax.Precision.HIGHEST) + biases[idx][0]

    # 1) f32-input Pallas path.
    out = jax.block_until_ready(
        projection_linear(hidden_state, weights_t, biases, idx))
    assert out.shape == (batch, seq, output_size)
    assert jnp.allclose(out, ref, atol=2e-2, rtol=2e-2)

    # 2) bf16 MXU path (f32 accumulation), looser tolerance.
    out_bf16 = jax.block_until_ready(
        projection_linear(hidden_state, weights_t, biases, idx,
                          compute_dtype=jnp.bfloat16))
    assert jnp.allclose(out_bf16, ref, atol=5e-2, rtol=5e-2)

    # 3) Tiny / non-128-aligned shape -> XLA fast path (same semantics),
    #    also checks idx clamping never sees an OOB DMA.
    small_x = jax.random.normal(k_x, (2, 8, 32), dtype=jnp.float32)
    w_s, b_s = init_params(k_p, layers, 32, 32)
    out_small = jax.block_until_ready(projection_linear(small_x, w_s, b_s, 2))
    ref_small = small_x @ w_s[2] + b_s[2][0]
    assert jnp.allclose(out_small, ref_small, atol=1e-3, rtol=1e-3)

    print("KERNEL_OK")
</pallas_src>

<mosaic_0001>
module attributes {stable_mosaic.version = 11 : i64} {
  func.func @_linear_select_kernel(%arg0: i32, %arg1: i32, %arg2: i32, %arg3: memref<1xi32, #tpu.memory_space<smem>>, %arg4: memref<16x512xf32, #tpu.memory_space<vmem>>, %arg5: memref<1x512x256xf32, #tpu.memory_space<vmem>>, %arg6: memref<1x1x256xf32, #tpu.memory_space<vmem>>, %arg7: memref<16x256xf32, #tpu.memory_space<vmem>>, %arg8: memref<16x256xf32, #tpu.memory_space<vmem>>) attributes {dimension_semantics = [#tpu.dimension_semantics<parallel>, #tpu.dimension_semantics<parallel>, #tpu.dimension_semantics<arbitrary>], iteration_bounds = array<i64: 1, 1, 2>, scalar_prefetch = 1 : i64, scratch_operands = 1 : i64, tpu.core_type = #tpu.core_type<tc>, window_params = [{transform_indices = @transform_0, window_bounds = array<i64: 16, 512>}, {transform_indices = @transform_1, window_bounds = array<i64: 1, 512, 256>}, {transform_indices = @transform_2, window_bounds = array<i64: 1, 1, 256>}, {transform_indices = @transform_3, window_bounds = array<i64: 16, 256>}]} {
    %c0_i32 = arith.constant 0 : i32
    %0 = arith.cmpi eq, %arg2, %c0_i32 : i32
    %1 = arith.extui %0 : i1 to i32
    %c0_i32_0 = arith.constant 0 : i32
    %2 = arith.cmpi ne, %1, %c0_i32_0 : i32
    scf.if %2 {
      %cst_10 = arith.constant 0.000000e+00 : f32
      %13 = vector.broadcast %cst_10 : f32 to vector<16x256xf32>
      %c0_11 = arith.constant 0 : index
      %c0_12 = arith.constant 0 : index
      %14 = vector.load %arg8[%c0_11, %c0_12] : memref<16x256xf32, #tpu.memory_space<vmem>>, vector<16x256xf32>
      tpu.vector_store %arg8[%c0_11, %c0_12], %13 {strides = array<i32>} : memref<16x256xf32, #tpu.memory_space<vmem>>, vector<16x256xf32>,
    } else {
    }
    %c0 = arith.constant 0 : index
    %c0_1 = arith.constant 0 : index
    %3 = vector.load %arg8[%c0, %c0_1] : memref<16x256xf32, #tpu.memory_space<vmem>>, vector<16x256xf32>
    %c0_2 = arith.constant 0 : index
    %c0_3 = arith.constant 0 : index
    %4 = vector.load %arg4[%c0_2, %c0_3] : memref<16x512xf32, #tpu.memory_space<vmem>>, vector<16x512xf32>
    %c0_4 = arith.constant 0 : index
    %c0_5 = arith.constant 0 : index
    %c0_6 = arith.constant 0 : index
    %5 = vector.load %arg5[%c0_4, %c0_5, %c0_6] : memref<1x512x256xf32, #tpu.memory_space<vmem>>, vector<1x512x256xf32>
    %6 = vector.shape_cast %5 : vector<1x512x256xf32> to vector<512x256xf32>
    %cst = arith.constant dense<0.000000e+00> : vector<16x256xf32>
    %7 = tpu.matmul %4, %6, %cst {dimension_numbers = #tpu.dot_dimension_numbers<[1], [0], [0], [1], [0, 0, 1, 1], [], []>} : vector<16x512xf32>, vector<512x256xf32>, vector<16x256xf32> -> vector<16x256xf32>
    %8 = arith.addf %3, %7 : vector<16x256xf32>
    %c0_7 = arith.constant 0 : index
    %c0_8 = arith.constant 0 : index
    %9 = vector.load %arg8[%c0_7, %c0_8] : memref<16x256xf32, #tpu.memory_space<vmem>>, vector<16x256xf32>
    tpu.vector_store %arg8[%c0_7, %c0_8], %8 {strides = array<i32>} : memref<16x256xf32, #tpu.memory_space<vmem>>, vector<16x256xf32>,
    %c1_i32 = arith.constant 1 : i32
    %10 = arith.cmpi eq, %arg2, %c1_i32 : i32
    %11 = arith.extui %10 : i1 to i32
    %c0_i32_9 = arith.constant 0 : i32
    %12 = arith.cmpi ne, %11, %c0_i32_9 : i32
    scf.if %12 {
      %c0_10 = arith.constant 0 : index
      %c0_11 = arith.constant 0 : index
      %13 = vector.load %arg8[%c0_10, %c0_11] : memref<16x256xf32, #tpu.memory_space<vmem>>, vector<16x256xf32>
      %c0_12 = arith.constant 0 : index
      %c0_13 = arith.constant 0 : index
      %c0_14 = arith.constant 0 : index
      %14 = vector.load %arg6[%c0_12, %c0_13, %c0_14] : memref<1x1x256xf32, #tpu.memory_space<vmem>>, vector<1x1x256xf32>
      %15 = vector.shape_cast %14 : vector<1x1x256xf32> to vector<1x256xf32>
      %16 = vector.broadcast %15 : vector<1x256xf32> to vector<16x256xf32>
      %17 = arith.addf %13, %16 : vector<16x256xf32>
      %c0_15 = arith.constant 0 : index
      %c0_16 = arith.constant 0 : index
      %18 = vector.load %arg7[%c0_15, %c0_16] : memref<16x256xf32, #tpu.memory_space<vmem>>, vector<16x256xf32>
      tpu.vector_store %arg7[%c0_15, %c0_16], %17 {strides = array<i32>} : memref<16x256xf32, #tpu.memory_space<vmem>>, vector<16x256xf32>,
    } else {
    }
    return
  }
  func.func @transform_0(%arg0: i32, %arg1: i32, %arg2: i32, %arg3: memref<1xi32, #tpu.memory_space<smem>>) -> (i32, i32) {
    %c0_i32 = arith.constant 0 : i32
    return %arg0, %arg2 : i32, i32
  }
  func.func @transform_1(%arg0: i32, %arg1: i32, %arg2: i32, %arg3: memref<1xi32, #tpu.memory_space<smem>>) -> (i32, i32, i32) {
    %c0 = arith.constant 0 : index
    %0 = memref.load %arg3[%c0] : memref<1xi32, #tpu.memory_space<smem>>
    %c0_i32 = arith.constant 0 : i32
    return %0, %arg2, %arg1 : i32, i32, i32
  }
  func.func @transform_2(%arg0: i32, %arg1: i32, %arg2: i32, %arg3: memref<1xi32, #tpu.memory_space<smem>>) -> (i32, i32, i32) {
    %c0 = arith.constant 0 : index
    %0 = memref.load %arg3[%c0] : memref<1xi32, #tpu.memory_space<smem>>
    %c0_i32 = arith.constant 0 : i32
    %c0_i32_0 = arith.constant 0 : i32
    return %0, %c0_i32, %arg1 : i32, i32, i32
  }
  func.func @transform_3(%arg0: i32, %arg1: i32, %arg2: i32, %arg3: memref<1xi32, #tpu.memory_space<smem>>) -> (i32, i32) {
    %c0_i32 = arith.constant 0 : i32
    return %arg0, %arg1 : i32, i32
  }
}

</mosaic_0001>

<llo_original>
// kernel: tpu_custom_call.1
$region0: #{tpu_custom_call.1}
  #allocation0 [shape = 'u32[]', space=smem, size = 0x4, offset = 0x4, fixed_abs, tag = 'smem constant byte address 0x4 - core index']
  #allocation1 [shape = 'u32[72,128]{1,0:T(1,128)}', space=vmem, size = 0x9000, scoped, tag = 'internal scratch']
  #allocation2 [shape = 'f32[16,256]{1,0:T(8,128)}', space=vmem, size = 0x4000, scoped, tag = 'scratch operand']
  #allocation3 [shape = 's32[1]{0}', space=sflag, size = 0x4, scoped, tag = 'scoped memory for tpu_custom_call.1']
  #allocation4 [shape = 's32[1]{0:T(128)S(6)}', space=smem, size = 0x200, scoped, tag = 'prefetched SMEM operand 0']
  %s0 = inlined_call_operand.<no memory space> [shape: s32[1], index: 0, kind: input, shape index: {}]
  %s1 = inlined_call_operand.hbm [shape: f32[16,1024], index: 1, kind: input, shape index: {}]
  %s2 = inlined_call_operand.hbm [shape: f32[3,1024,256], index: 2, kind: input, shape index: {}]
  %s3 = inlined_call_operand.hbm [shape: f32[3,1,256], index: 3, kind: input, shape index: {}]
  %s4 = inlined_call_operand.hbm [shape: f32[16,256], index: 4, kind: output, shape index: {}]
  %s5 = sld [smem:[#allocation0]]
  $region65: #{tpu_custom_call.1} parent=0
    _
  %s7 = ssub.s32 1, %s5
  %s8 = scalar_select 0, %s7, %s5
  %9 = sst [smem:[#allocation4]] %s0
  $region1: #{tpu_custom_call.1} parent=0
    #allocation5 [shape = 'u8[65536]{0}', space=vmem, size = 0x10000, scoped, tag = 'input window, operand 1']
    #allocation6 [shape = 's32[2]{0}', space=sflag, size = 0x8, scoped, tag = 'scoped memory for tpu_custom_call.1']
    #allocation7 [shape = 's32[2]{0}', space=sflag, size = 0x8, scoped, tag = 'scoped memory for tpu_custom_call.1']
    #allocation8 [shape = 'u8[1048576]{0}', space=vmem, size = 0x100000, scoped, tag = 'input window, operand 2']
    #allocation9 [shape = 's32[2]{0}', space=sflag, size = 0x8, scoped, tag = 'scoped memory for tpu_custom_call.1']
    #allocation10 [shape = 'u8[1024]{0}', space=vmem, size = 0x400, scoped, tag = 'input window, operand 3, single buffered']
    #allocation11 [shape = 'u8[16384]{0}', space=vmem, size = 0x4000, scoped, tag = 'output window, operand 0, single buffered']
    %10 = vsyncpa [#allocation6], 0
    %s11 = scalar_lea.sflag [#allocation6], 1
    %12 = vsyncpa %s11, 0
    %13 = vsyncpa [#allocation9], 0
    %s14 = scalar_lea.sflag [#allocation9], 1
    %15 = vsyncpa %s14, 0
    %16 = vsyncpa [#allocation7], 0
    loop: start=0, step=1, limit=4
    $region2: #{tpu_custom_call.1} parent=1 // loop_pre_header
      _
    $region3: #{tpu_custom_call.1} parent=1 // loop_header
      %s18 = sphi 0, %s22
      %p19 = scmp.ge.s32.totalorder %s18, 4
      %s25 = sphi 0, %s44
      %s26 = sphi 0, %s40
      %s27 = sphi 0, %s36
      %s28 = sphi 0, %s25
      %s29 = sphi 0, %s26
      %s30 = sphi 0, %s27
      %s31 = sphi 0, %s28
      %s32 = sphi 0, %s29
      %s33 = sphi 0, %s30
      %s49 = sphi 0, %s51
      %s52 = sphi 0, %s49
      %s53 = sphi 0, %s52
      %s69 = sphi 0, %s53
      %s81 = sphi 0, %s83
      %s84 = sphi 0, %s81
      %s85 = sphi 0, %s84
      %s101 = sphi 0, %s85
      %s111 = sphi 0, %s113
      %s114 = sphi 0, %s111
      %s115 = sphi 0, %s114
      %s131 = sphi 0, %s115
      %s139 = sphi 0, %s141
      %s142 = sphi 0, %s139
      %s143 = sphi 0, %s142
      %s159 = sphi 0, %s143
    $region4: #{tpu_custom_call.1} parent=1 // loop_header_branch
      %21 = sbr.rel (%p19) target = $region8
    $region5: #{tpu_custom_call.1} parent=1 // loop_body
      %s23 = ssub.s32 %s18, 1
      %s24 = ssub.s32 %s18, 2
      %s34 = sadd.s32 1, %s27
      %p35 = scmp.ge.s32.totalorder %s34, 2
      %s36 = scalar_select %p35, 0, %s34
      %s37 = sadd.s32 1, %s26
      %s38 = scalar_select %p35, %s37, %s26
      %p39 = scmp.ge.s32.totalorder %s38, 1
      %s40 = scalar_select %p39, 0, %s38
      %s41 = sadd.s32 1, %s25
      %s42 = scalar_select %p39, %s41, %s25
      %p43 = scmp.ge.s32.totalorder %s42, 1
      %s44 = scalar_select %p43, 0, %s42
      %s45 = ssub.s32 %s25, %s44
      %s46 = ssub.s32 %s27, %s36
      %s47 = sor.u32 %s45, %s46
      %p48 = scmp.eq.s32.totalorder %s47, 0
      %s50 = sadd.s32 %s49, 1
      %s51 = scalar_select %p48, %s49, %s50
      %p54 = pneg %p48
      %p55 = scmp.eq.s32.totalorder %s18, 1
      %p56 = por %p54, %p55
      %p57 = scmp.ne.s32.totalorder %s49, %s52
      %p58 = scmp.eq.s32.totalorder %s18, 0
      %p59 = por %p57, %p58
      %p60 = scmp.ne.s32.totalorder %s49, %s52
      %p61 = scmp.eq.s32.totalorder %s23, 1
      %p62 = por %p60, %p61
      %p63 = scmp.ne.s32.totalorder %s52, %s53
      %p64 = scmp.eq.s32.totalorder %s23, 0
      %p65 = por %p63, %p64
      %p66 = scmp.ne.s32.totalorder %s52, %s53
      %p67 = scmp.eq.s32.totalorder %s24, 1
      %p68 = por %p66, %p67
      %p70 = scmp.ne.s32.totalorder %s53, %s69
      %p71 = scmp.eq.s32.totalorder %s24, 0
      %p72 = por %p70, %p71
      %s73 = sld [smem:[#allocation4]]
      %s74 = sld [smem:[#allocation4]]
      %s75 = ssub.s32 %s73, %s74
      %s76 = ssub.s32 %s27, %s36
      %s77 = sor.u32 %s75, %s76
      %s78 = ssub.s32 %s26, %s40
      %s79 = sor.u32 %s77, %s78
      %p80 = scmp.eq.s32.totalorder %s79, 0
      %s82 = sadd.s32 %s81, 1
      %s83 = scalar_select %p80, %s81, %s82
      %p86 = pneg %p80
      %p87 = scmp.eq.s32.totalorder %s18, 1
      %p88 = por %p86, %p87
      %p89 = scmp.ne.s32.totalorder %s81, %s84
      %p90 = scmp.eq.s32.totalorder %s18, 0
      %p91 = por %p89, %p90
      %p92 = scmp.ne.s32.totalorder %s81, %s84
      %p93 = scmp.eq.s32.totalorder %s23, 1
      %p94 = por %p92, %p93
      %p95 = scmp.ne.s32.totalorder %s84, %s85
      %p96 = scmp.eq.s32.totalorder %s23, 0
      %p97 = por %p95, %p96
      %p98 = scmp.ne.s32.totalorder %s84, %s85
      %p99 = scmp.eq.s32.totalorder %s24, 1
      %p100 = por %p98, %p99
      %p102 = scmp.ne.s32.totalorder %s85, %s101
      %p103 = scmp.eq.s32.totalorder %s24, 0
      %p104 = por %p102, %p103
      %s105 = sld [smem:[#allocation4]]
      %s106 = sld [smem:[#allocation4]]
      %s107 = ssub.s32 %s105, %s106
      %s108 = ssub.s32 %s26, %s40
      %s109 = sor.u32 %s107, %s108
      %p110 = scmp.eq.s32.totalorder %s109, 0
      %s112 = sadd.s32 %s111, 1
      %s113 = scalar_select %p110, %s111, %s112
      %p116 = pneg %p110
      %p117 = scmp.eq.s32.totalorder %s18, 1
      %p118 = por %p116, %p117
      %p119 = scmp.ne.s32.totalorder %s111, %s114
      %p120 = scmp.eq.s32.totalorder %s18, 0
      %p121 = por %p119, %p120
      %p122 = scmp.ne.s32.totalorder %s111, %s114
      %p123 = scmp.eq.s32.totalorder %s23, 1
      %p124 = por %p122, %p123
      %p125 = scmp.ne.s32.totalorder %s114, %s115
      %p126 = scmp.eq.s32.totalorder %s23, 0
      %p127 = por %p125, %p126
      %p128 = scmp.ne.s32.totalorder %s114, %s115
      %p129 = scmp.eq.s32.totalorder %s24, 1
      %p130 = por %p128, %p129
      %p132 = scmp.ne.s32.totalorder %s115, %s131
      %p133 = scmp.eq.s32.totalorder %s24, 0
      %p134 = por %p132, %p133
      %s135 = ssub.s32 %s25, %s44
      %s136 = ssub.s32 %s26, %s40
      %s137 = sor.u32 %s135, %s136
      %p138 = scmp.eq.s32.totalorder %s137, 0
      %s140 = sadd.s32 %s139, 1
      %s141 = scalar_select %p138, %s139, %s140
      %p144 = pneg %p138
      %p145 = scmp.eq.s32.totalorder %s18, 1
      %p146 = por %p144, %p145
      %p147 = scmp.ne.s32.totalorder %s139, %s142
      %p148 = scmp.eq.s32.totalorder %s18, 0
      %p149 = por %p147, %p148
      %p150 = scmp.ne.s32.totalorder %s139, %s142
      %p151 = scmp.eq.s32.totalorder %s23, 1
      %p152 = por %p150, %p151
      %p153 = scmp.ne.s32.totalorder %s142, %s143
      %p154 = scmp.eq.s32.totalorder %s23, 0
      %p155 = por %p153, %p154
      %p156 = scmp.ne.s32.totalorder %s142, %s143
      %p157 = scmp.eq.s32.totalorder %s24, 1
      %p158 = por %p156, %p157
      %p160 = scmp.ne.s32.totalorder %s143, %s159
      %p161 = scmp.eq.s32.totalorder %s24, 0
      %p162 = por %p160, %p161
      %p163 = scmp.le.s32.totalorder 1, %s18
      %p164 = scmp.lt.s32.totalorder %s18, 3
      %p165 = pnand %p163, %p164
      %p166 = pneg %p165
      // Predicated region
      $region9: #{tpu_custom_call.1} parent=5 // pred_check
        _
      $region10: #{tpu_custom_call.1} parent=5 // pred_check_branch
        %168 = sbr.rel (%p165) target = $region12
      $region11: #{tpu_custom_call.1} parent=5 // pred_region
        %s169 = ssub.s32 %s18, 1
        // Predicated region
        $region13: #{tpu_custom_call.1} parent=11 // pred_check
          %p170 = pneg %p127
        $region14: #{tpu_custom_call.1} parent=11 // pred_check_branch
          %172 = sbr.rel (%p170) target = $region16
        $region15: #{tpu_custom_call.1} parent=11 // pred_region
          %s173 = sld [smem:[#allocation4]]
          %s174 = smul.u32 2, %s29
          %176 = vsyncadd [#allocation9], 0
          %s177 = smul.addr %s173, 2
          %s178 = sadd.s32 %s174, %s177
          %s179 = scalar_lea.hbm %s3, %s178
          %s181 = sshll.u32 %s179, 4
          %s182 = int_to_ptr.hbm [resolvable:$true] %s181
          %s183 = sshll.u32 [#allocation10], 4
          %s184 = int_to_ptr.vmem [resolvable:$true] %s183
          %186 = dma.hbm_to_vmem [thread:$0]  %s182, 32, %s184, [#allocation9]
        $region16: #{tpu_custom_call.1} parent=11 // pred_fallthru
          _
      $region12: #{tpu_custom_call.1} parent=5 // pred_fallthru
        _
      %p187 = scmp.lt.s32.totalorder %s18, 2
      // Predicated region
      $region17: #{tpu_custom_call.1} parent=5 // pred_check
        %p188 = pneg %p187
      $region18: #{tpu_custom_call.1} parent=5 // pred_check_branch
        %190 = sbr.rel (%p188) target = $region20
      $region19: #{tpu_custom_call.1} parent=5 // pred_region
        // Predicated region
        $region21: #{tpu_custom_call.1} parent=19 // pred_check
          %p191 = pneg %p59
        $region22: #{tpu_custom_call.1} parent=19 // pred_check_branch
          %193 = sbr.rel (%p191) target = $region24
        $region23: #{tpu_custom_call.1} parent=19 // pred_region
          %s194 = sand.u32 %s49, 1
          %s195 = scalar_lea.sflag [#allocation6], %s194
          %s196 = sand.u32 %s49, 1
          %s197 = smul.addr %s196, 64
          %s198 = scalar_lea.vmem [#allocation5], %s197
          %s199 = smul.u32 2, %s25
          %s200 = smul.u32 4, %s27
          %202 = vsyncadd %s195, 0
          %s203 = smul.addr %s199, 8
          %s204 = sadd.s32 %s200, %s203
          %s205 = smul.addr %s204, 8
          %s206 = scalar_lea.hbm %s1, %s205
          %s207 = sshll.u32 %s206, 4
          %s208 = int_to_ptr.hbm [resolvable:$true] %s207
          %s209 = sshll.u32 %s198, 4
          %s210 = int_to_ptr.vmem [resolvable:$true] %s209
          %215 = dma.hbm_to_vmem [thread:$0]  %s208, 1024, %s210, %s195, 1024, 512, 32
        $region24: #{tpu_custom_call.1} parent=19 // pred_fallthru
          _
        // Predicated region
        $region25: #{tpu_custom_call.1} parent=19 // pred_check
          %p216 = pneg %p91
        $region26: #{tpu_custom_call.1} parent=19 // pred_check_branch
          %218 = sbr.rel (%p216) target = $region28
        $region27: #{tpu_custom_call.1} parent=19 // pred_region
          %s219 = sand.u32 %s18, 1
          %s220 = scalar_lea.sflag [#allocation9], %s219
          %s221 = sand.u32 %s81, 1
          %s222 = smul.addr %s221, 1024
          %s223 = scalar_lea.vmem [#allocation8], %s222
          %s224 = sld [smem:[#allocation4]]
          %s225 = smul.u32 64, %s27
          %s226 = smul.u32 2, %s26
          %228 = vsyncadd %s220, 0
          %s229 = smul.addr %s225, 2
          %s230 = sadd.s32 %s226, %s229
          %s231 = smul.addr %s224, 256
          %s232 = sadd.s32 %s230, %s231
          %s233 = smul.addr %s232, 8
          %s234 = scalar_lea.hbm %s2, %s233
          %s235 = sshll.u32 %s234, 4
          %s236 = int_to_ptr.hbm [resolvable:$true] %s235
          %s237 = sshll.u32 %s223, 4
          %s238 = int_to_ptr.vmem [resolvable:$true] %s237
          %243 = dma.hbm_to_vmem [thread:$0]  %s236, 16384, %s238, %s220, 256, 256, 16
        $region28: #{tpu_custom_call.1} parent=19 // pred_fallthru
          _
      $region20: #{tpu_custom_call.1} parent=5 // pred_fallthru
        _
      %p244 = scmp.le.s32.totalorder 1, %s18
      %p245 = scmp.lt.s32.totalorder %s18, 3
      %p246 = pnand %p244, %p245
      %p247 = pneg %p246
      // Predicated region
      $region29: #{tpu_custom_call.1} parent=5 // pred_check
        _
      $region30: #{tpu_custom_call.1} parent=5 // pred_check_branch
        %249 = sbr.rel (%p246) target = $region32
      $region31: #{tpu_custom_call.1} parent=5 // pred_region
        %s250 = ssub.s32 %s18, 1
        %s251 = sand.u32 %s52, 1
        %s252 = scalar_lea.sflag [#allocation6], %s251
        %s253 = sand.u32 %s52, 1
        %s254 = smul.addr %s253, 64
        %s255 = scalar_lea.vmem [#allocation5], %s254
        // Predicated region
        $region33: #{tpu_custom_call.1} parent=31 // pred_check
          %p256 = pneg %p65
        $region34: #{tpu_custom_call.1} parent=31 // pred_check_branch
          %258 = sbr.rel (%p256) target = $region36
        $region35: #{tpu_custom_call.1} parent=31 // pred_region
          %260 = dma.done %s252, 1024
        $region36: #{tpu_custom_call.1} parent=31 // pred_fallthru
          _
        %s261 = sand.u32 %s23, 1
        %s262 = scalar_lea.sflag [#allocation9], %s261
        %s263 = sand.u32 %s84, 1
        %s264 = smul.addr %s263, 1024
        %s265 = scalar_lea.vmem [#allocation8], %s264
        // Predicated region
        $region37: #{tpu_custom_call.1} parent=31 // pred_check
          %p266 = pneg %p97
        $region38: #{tpu_custom_call.1} parent=31 // pred_check_branch
          %268 = sbr.rel (%p266) target = $region40
        $region39: #{tpu_custom_call.1} parent=31 // pred_region
          %270 = dma.done %s262, 16384
        $region40: #{tpu_custom_call.1} parent=31 // pred_fallthru
          _
        // Predicated region
        $region41: #{tpu_custom_call.1} parent=31 // pred_check
          %p271 = pneg %p127
        $region42: #{tpu_custom_call.1} parent=31 // pred_check_branch
          %273 = sbr.rel (%p271) target = $region44
        $region43: #{tpu_custom_call.1} parent=31 // pred_region
          %275 = dma.done [#allocation9], 32
        $region44: #{tpu_custom_call.1} parent=31 // pred_fallthru
          _
        %s276 = sand.u32 %s52, 1
        %s277 = scalar_lea.sflag [#allocation6], %s276
        %s278 = sand.u32 %s52, 1
        %s279 = smul.addr %s278, 64
        %s280 = scalar_lea.vmem [#allocation5], %s279
        %p281 = pneg %p65
        %p282 = pneg %p62
        %s283 = sand.u32 %s23, 1
        %s284 = scalar_lea.sflag [#allocation9], %s283
        %s285 = sand.u32 %s84, 1
        %s286 = smul.addr %s285, 1024
        %s287 = scalar_lea.vmem [#allocation8], %s286
        %p288 = pneg %p97
        %p289 = pneg %p94
        %p290 = pneg %p127
        %p291 = pneg %p124
        %p292 = pneg %p155
        %p293 = pneg %p152
        %s294 = smul.u32 2, %s28
        %s295 = smul.u32 4, %s30
        %s296 = sld [smem:[#allocation4]]
        %s297 = smul.u32 64, %s30
        %s298 = smul.u32 2, %s29
        %s299 = sld [smem:[#allocation4]]
        %s300 = smul.u32 2, %s29
        %s301 = smul.u32 2, %s28
        %s302 = smul.u32 2, %s29
        %p303 = scmp.eq.s32.totalorder %s30, 0
        // Predicated region
        $region45: #{tpu_custom_call.1} parent=31 // pred_check
          %p304 = pneg %p303
        $region46: #{tpu_custom_call.1} parent=31 // pred_check_branch
          %306 = sbr.rel (%p304) target = $region48
        $region47: #{tpu_custom_call.1} parent=31 // pred_region
          %307 = vst [vmem:[#allocation2] sm:$0xff] 0.0
          %308 = vst [vmem:[#allocation2 + $0x8] sm:$0xff] 0.0
          %309 = vst [vmem:[#allocation2 + $0x10] sm:$0xff] 0.0
          %310 = vst [vmem:[#allocation2 + $0x18] sm:$0xff] 0.0
        $region48: #{tpu_custom_call.1} parent=31 // pred_fallthru
          _
        %v311 = vld [vmem:[#allocation2] sm:$0xff]
        %v312 = vld [vmem:[#allocation2 + $0x8] sm:$0xff]
        %v313 = vld [vmem:[#allocation2 + $0x10] sm:$0xff]
        %v314 = vld [vmem:[#allocation2 + $0x18] sm:$0xff]
        %v315 = vld [vmem:[%s255] sm:$0xff]
        %v316 = vld [vmem:[%s255 + $0x8] sm:$0xff]
        %v317 = vld [vmem:[%s255 + $0x10] sm:$0xff]
        %v318 = vld [vmem:[%s255 + $0x18] sm:$0xff]
        %v319 = vld [vmem:[%s255 + $0x20] sm:$0xff]
        %v320 = vld [vmem:[%s255 + $0x28] sm:$0xff]
        %v321 = vld [vmem:[%s255 + $0x30] sm:$0xff]
        %v322 = vld [vmem:[%s255 + $0x38] sm:$0xff]
        %v323 = vld [vmem:[%s265] sm:$0xff]
        %v324 = vld [vmem:[%s265 + $0x8] sm:$0xff]
        %v325 = vld [vmem:[%s265 + $0x10] sm:$0xff]
        %v326 = vld [vmem:[%s265 + $0x18] sm:$0xff]
        %v327 = vld [vmem:[%s265 + $0x20] sm:$0xff]
        %v328 = vld [vmem:[%s265 + $0x28] sm:$0xff]
        %v329 = vld [vmem:[%s265 + $0x30] sm:$0xff]
        %v330 = vld [vmem:[%s265 + $0x38] sm:$0xff]
        %v331 = vld [vmem:[%s265 + $0x40] sm:$0xff]
        %v332 = vld [vmem:[%s265 + $0x48] sm:$0xff]
        %v333 = vld [vmem:[%s265 + $0x50] sm:$0xff]
        %v334 = vld [vmem:[%s265 + $0x58] sm:$0xff]
        %v335 = vld [vmem:[%s265 + $0x60] sm:$0xff]
        %v336 = vld [vmem:[%s265 + $0x68] sm:$0xff]
        %v337 = vld [vmem:[%s265 + $0x70] sm:$0xff]
        %v338 = vld [vmem:[%s265 + $0x78] sm:$0xff]
        %v339 = vld [vmem:[%s265 + $0x80] sm:$0xff]
        %v340 = vld [vmem:[%s265 + $0x88] sm:$0xff]
        %v341 = vld [vmem:[%s265 + $0x90] sm:$0xff]
        %v342 = vld [vmem:[%s265 + $0x98] sm:$0xff]
        %v343 = vld [vmem:[%s265 + $0xa0] sm:$0xff]
        %v344 = vld [vmem:[%s265 + $0xa8] sm:$0xff]
        %v345 = vld [vmem:[%s265 + $0xb0] sm:$0xff]
        %v346 = vld [vmem:[%s265 + $0xb8] sm:$0xff]
        %v347 = vld [vmem:[%s265 + $0xc0] sm:$0xff]
        %v348 = vld [vmem:[%s265 + $0xc8] sm:$0xff]
        %v349 = vld [vmem:[%s265 + $0xd0] sm:$0xff]
        %v350 = vld [vmem:[%s265 + $0xd8] sm:$0xff]
        %v351 = vld [vmem:[%s265 + $0xe0] sm:$0xff]
        %v352 = vld [vmem:[%s265 + $0xe8] sm:$0xff]
        %v353 = vld [vmem:[%s265 + $0xf0] sm:$0xff]
        %v354 = vld [vmem:[%s265 + $0xf8] sm:$0xff]
        %v355 = vld [vmem:[%s265 + $0x100] sm:$0xff]
        %v356 = vld [vmem:[%s265 + $0x108] sm:$0xff]
        %v357 = vld [vmem:[%s265 + $0x110] sm:$0xff]
        %v358 = vld [vmem:[%s265 + $0x118] sm:$0xff]
        %v359 = vld [vmem:[%s265 + $0x120] sm:$0xff]
        %v360 = vld [vmem:[%s265 + $0x128] sm:$0xff]
        %v361 = vld [vmem:[%s265 + $0x130] sm:$0xff]
        %v362 = vld [vmem:[%s265 + $0x138] sm:$0xff]
        %v363 = vld [vmem:[%s265 + $0x140] sm:$0xff]
        %v364 = vld [vmem:[%s265 + $0x148] sm:$0xff]
        %v365 = vld [vmem:[%s265 + $0x150] sm:$0xff]
        %v366 = vld [vmem:[%s265 + $0x158] sm:$0xff]
        %v367 = vld [vmem:[%s265 + $0x160] sm:$0xff]
        %v368 = vld [vmem:[%s265 + $0x168] sm:$0xff]
        %v369 = vld [vmem:[%s265 + $0x170] sm:$0xff]
        %v370 = vld [vmem:[%s265 + $0x178] sm:$0xff]
        %v371 = vld [vmem:[%s265 + $0x180] sm:$0xff]
        %v372 = vld [vmem:[%s265 + $0x188] sm:$0xff]
        %v373 = vld [vmem:[%s265 + $0x190] sm:$0xff]
        %v374 = vld [vmem:[%s265 + $0x198] sm:$0xff]
        %v375 = vld [vmem:[%s265 + $0x1a0] sm:$0xff]
        %v376 = vld [vmem:[%s265 + $0x1a8] sm:$0xff]
        %v377 = vld [vmem:[%s265 + $0x1b0] sm:$0xff]
        %v378 = vld [vmem:[%s265 + $0x1b8] sm:$0xff]
        %v379 = vld [vmem:[%s265 + $0x1c0] sm:$0xff]
        %v380 = vld [vmem:[%s265 + $0x1c8] sm:$0xff]
        %v381 = vld [vmem:[%s265 + $0x1d0] sm:$0xff]
        %v382 = vld [vmem:[%s265 + $0x1d8] sm:$0xff]
        %v383 = vld [vmem:[%s265 + $0x1e0] sm:$0xff]
        %v384 = vld [vmem:[%s265 + $0x1e8] sm:$0xff]
        %v385 = vld [vmem:[%s265 + $0x1f0] sm:$0xff]
        %v386 = vld [vmem:[%s265 + $0x1f8] sm:$0xff]
        %v387 = vld [vmem:[%s265 + $0x200] sm:$0xff]
        %v388 = vld [vmem:[%s265 + $0x208] sm:$0xff]
        %v389 = vld [vmem:[%s265 + $0x210] sm:$0xff]
        %v390 = vld [vmem:[%s265 + $0x218] sm:$0xff]
        %v391 = vld [vmem:[%s265 + $0x220] sm:$0xff]
        %v392 = vld [vmem:[%s265 + $0x228] sm:$0xff]
        %v393 = vld [vmem:[%s265 + $0x230] sm:$0xff]
        %v394 = vld [vmem:[%s265 + $0x238] sm:$0xff]
        %v395 = vld [vmem:[%s265 + $0x240] sm:$0xff]
        %v396 = vld [vmem:[%s265 + $0x248] sm:$0xff]
        %v397 = vld [vmem:[%s265 + $0x250] sm:$0xff]
        %v398 = vld [vmem:[%s265 + $0x258] sm:$0xff]
        %v399 = vld [vmem:[%s265 + $0x260] sm:$0xff]
        %v400 = vld [vmem:[%s265 + $0x268] sm:$0xff]
        %v401 = vld [vmem:[%s265 + $0x270] sm:$0xff]
        %v402 = vld [vmem:[%s265 + $0x278] sm:$0xff]
        %v403 = vld [vmem:[%s265 + $0x280] sm:$0xff]
        %v404 = vld [vmem:[%s265 + $0x288] sm:$0xff]
        %v405 = vld [vmem:[%s265 + $0x290] sm:$0xff]
        %v406 = vld [vmem:[%s265 + $0x298] sm:$0xff]
        %v407 = vld [vmem:[%s265 + $0x2a0] sm:$0xff]
        %v408 = vld [vmem:[%s265 + $0x2a8] sm:$0xff]
        %v409 = vld [vmem:[%s265 + $0x2b0] sm:$0xff]
        %v410 = vld [vmem:[%s265 + $0x2b8] sm:$0xff]
        %v411 = vld [vmem:[%s265 + $0x2c0] sm:$0xff]
        %v412 = vld [vmem:[%s265 + $0x2c8] sm:$0xff]
        %v413 = vld [vmem:[%s265 + $0x2d0] sm:$0xff]
        %v414 = vld [vmem:[%s265 + $0x2d8] sm:$0xff]
        %v415 = vld [vmem:[%s265 + $0x2e0] sm:$0xff]
        %v416 = vld [vmem:[%s265 + $0x2e8] sm:$0xff]
        %v417 = vld [vmem:[%s265 + $0x2f0] sm:$0xff]
        %v418 = vld [vmem:[%s265 + $0x2f8] sm:$0xff]
        %v419 = vld [vmem:[%s265 + $0x300] sm:$0xff]
        %v420 = vld [vmem:[%s265 + $0x308] sm:$0xff]
        %v421 = vld [vmem:[%s265 + $0x310] sm:$0xff]
        %v422 = vld [vmem:[%s265 + $0x318] sm:$0xff]
        %v423 = vld [vmem:[%s265 + $0x320] sm:$0xff]
        %v424 = vld [vmem:[%s265 + $0x328] sm:$0xff]
        %v425 = vld [vmem:[%s265 + $0x330] sm:$0xff]
        %v426 = vld [vmem:[%s265 + $0x338] sm:$0xff]
        %v427 = vld [vmem:[%s265 + $0x340] sm:$0xff]
        %v428 = vld [vmem:[%s265 + $0x348] sm:$0xff]
        %v429 = vld [vmem:[%s265 + $0x350] sm:$0xff]
        %v430 = vld [vmem:[%s265 + $0x358] sm:$0xff]
        %v431 = vld [vmem:[%s265 + $0x360] sm:$0xff]
        %v432 = vld [vmem:[%s265 + $0x368] sm:$0xff]
        %v433 = vld [vmem:[%s265 + $0x370] sm:$0xff]
        %v434 = vld [vmem:[%s265 + $0x378] sm:$0xff]
        %v435 = vld [vmem:[%s265 + $0x380] sm:$0xff]
        %v436 = vld [vmem:[%s265 + $0x388] sm:$0xff]
        %v437 = vld [vmem:[%s265 + $0x390] sm:$0xff]
        %v438 = vld [vmem:[%s265 + $0x398] sm:$0xff]
        %v439 = vld [vmem:[%s265 + $0x3a0] sm:$0xff]
        %v440 = vld [vmem:[%s265 + $0x3a8] sm:$0xff]
        %v441 = vld [vmem:[%s265 + $0x3b0] sm:$0xff]
        %v442 = vld [vmem:[%s265 + $0x3b8] sm:$0xff]
        %v443 = vld [vmem:[%s265 + $0x3c0] sm:$0xff]
        %v444 = vld [vmem:[%s265 + $0x3c8] sm:$0xff]
        %v445 = vld [vmem:[%s265 + $0x3d0] sm:$0xff]
        %v446 = vld [vmem:[%s265 + $0x3d8] sm:$0xff]
        %v447 = vld [vmem:[%s265 + $0x3e0] sm:$0xff]
        %v448 = vld [vmem:[%s265 + $0x3e8] sm:$0xff]
        %v449 = vld [vmem:[%s265 + $0x3f0] sm:$0xff]
        %v450 = vld [vmem:[%s265 + $0x3f8] sm:$0xff]
        %451 = vmatpush.msra.mxu0 %v353
        %452 = vmatpush.msra.mxu0 %v351
        %453 = vmatpush.msra.mxu0 %v349
        %454 = vmatpush.msra.mxu0 %v347
        %455 = vmatpush.msra.mxu0 %v345
        %456 = vmatpush.msra.mxu0 %v343
        %457 = vmatpush.msra.mxu0 %v341
        %458 = vmatpush.msra.mxu0 %v339
        %459 = vmatpush.msra.mxu0 %v337
        %460 = vmatpush.msra.mxu0 %v335
        %461 = vmatpush.msra.mxu0 %v333
        %462 = vmatpush.msra.mxu0 %v331
        %463 = vmatpush.msra.mxu0 %v329
        %464 = vmatpush.msra.mxu0 %v327
        %465 = vmatpush.msra.mxu0 %v325
        %466 = vmatpush.msra.mxu0 %v323
        %467 = vmatmul.f32.gmra.mxu0 %v315
        %v468 = vpop.f32.mrf.mxu0
        %v469 = vadd.f32 0.0, %v468
        %470 = vmatmul.f32.gmra.mxu0 %v319
        %v471 = vpop.f32.mrf.mxu0
        %v472 = vadd.f32 0.0, %v471
        %473 = vdwg.mxu0
        %474 = vmatpush.msra.mxu0 %v385
        %475 = vmatpush.msra.mxu0 %v383
        %476 = vmatpush.msra.mxu0 %v381
        %477 = vmatpush.msra.mxu0 %v379
        %478 = vmatpush.msra.mxu0 %v377
        %479 = vmatpush.msra.mxu0 %v375
        %480 = vmatpush.msra.mxu0 %v373
        %481 = vmatpush.msra.mxu0 %v371
        %482 = vmatpush.msra.mxu0 %v369
        %483 = vmatpush.msra.mxu0 %v367
        %484 = vmatpush.msra.mxu0 %v365
        %485 = vmatpush.msra.mxu0 %v363
        %486 = vmatpush.msra.mxu0 %v361
        %487 = vmatpush.msra.mxu0 %v359
        %488 = vmatpush.msra.mxu0 %v357
        %489 = vmatpush.msra.mxu0 %v355
        %490 = vmatmul.f32.gmra.mxu0 %v316
        %v491 = vpop.f32.mrf.mxu0
        %v492 = vadd.f32 %v469, %v491
        %493 = vmatmul.f32.gmra.mxu0 %v320
        %v494 = vpop.f32.mrf.mxu0
        %v495 = vadd.f32 %v472, %v494
        %496 = vdwg.mxu0
        %497 = vmatpush.msra.mxu0 %v417
        %498 = vmatpush.msra.mxu0 %v415
        %499 = vmatpush.msra.mxu0 %v413
        %500 = vmatpush.msra.mxu0 %v411
        %501 = vmatpush.msra.mxu0 %v409
        %502 = vmatpush.msra.mxu0 %v407
        %503 = vmatpush.msra.mxu0 %v405
        %504 = vmatpush.msra.mxu0 %v403
        %505 = vmatpush.msra.mxu0 %v401
        %506 = vmatpush.msra.mxu0 %v399
        %507 = vmatpush.msra.mxu0 %v397
        %508 = vmatpush.msra.mxu0 %v395
        %509 = vmatpush.msra.mxu0 %v393
        %510 = vmatpush.msra.mxu0 %v391
        %511 = vmatpush.msra.mxu0 %v389
        %512 = vmatpush.msra.mxu0 %v387
        %513 = vmatmul.f32.gmra.mxu0 %v317
        %v514 = vpop.f32.mrf.mxu0
        %v515 = vadd.f32 %v492, %v514
        %516 = vmatmul.f32.gmra.mxu0 %v321
        %v517 = vpop.f32.mrf.mxu0
        %v518 = vadd.f32 %v495, %v517
        %519 = vdwg.mxu0
        %520 = vmatpush.msra.mxu0 %v449
        %521 = vmatpush.msra.mxu0 %v447
        %522 = vmatpush.msra.mxu0 %v445
        %523 = vmatpush.msra.mxu0 %v443
        %524 = vmatpush.msra.mxu0 %v441
        %525 = vmatpush.msra.mxu0 %v439
        %526 = vmatpush.msra.mxu0 %v437
        %527 = vmatpush.msra.mxu0 %v435
        %528 = vmatpush.msra.mxu0 %v433
        %529 = vmatpush.msra.mxu0 %v431
        %530 = vmatpush.msra.mxu0 %v429
        %531 = vmatpush.msra.mxu0 %v427
        %532 = vmatpush.msra.mxu0 %v425
        %533 = vmatpush.msra.mxu0 %v423
        %534 = vmatpush.msra.mxu0 %v421
        %535 = vmatpush.msra.mxu0 %v419
        %536 = vmatmul.f32.gmra.mxu0 %v318
        %v537 = vpop.f32.mrf.mxu0
        %v538 = vadd.f32 %v515, %v537
        %539 = vmatmul.f32.gmra.mxu0 %v322
        %v540 = vpop.f32.mrf.mxu0
        %v541 = vadd.f32 %v518, %v540
        %542 = vdwg.mxu0
        %543 = vmatpush.msra.mxu0 %v354
        %544 = vmatpush.msra.mxu0 %v352
        %545 = vmatpush.msra.mxu0 %v350
        %546 = vmatpush.msra.mxu0 %v348
        %547 = vmatpush.msra.mxu0 %v346
        %548 = vmatpush.msra.mxu0 %v344
        %549 = vmatpush.msra.mxu0 %v342
        %550 = vmatpush.msra.mxu0 %v340
        %551 = vmatpush.msra.mxu0 %v338
        %552 = vmatpush.msra.mxu0 %v336
        %553 = vmatpush.msra.mxu0 %v334
        %554 = vmatpush.msra.mxu0 %v332
        %555 = vmatpush.msra.mxu0 %v330
        %556 = vmatpush.msra.mxu0 %v328
        %557 = vmatpush.msra.mxu0 %v326
        %558 = vmatpush.msra.mxu0 %v324
        %559 = vmatmul.f32.gmra.mxu0 %v315
        %v560 = vpop.f32.mrf.mxu0
        %v561 = vadd.f32 0.0, %v560
        %562 = vmatmul.f32.gmra.mxu0 %v319
        %v563 = vpop.f32.mrf.mxu0
        %v564 = vadd.f32 0.0, %v563
        %565 = vdwg.mxu0
        %566 = vmatpush.msra.mxu0 %v386
        %567 = vmatpush.msra.mxu0 %v384
        %568 = vmatpush.msra.mxu0 %v382
        %569 = vmatpush.msra.mxu0 %v380
        %570 = vmatpush.msra.mxu0 %v378
        %571 = vmatpush.msra.mxu0 %v376
        %572 = vmatpush.msra.mxu0 %v374
        %573 = vmatpush.msra.mxu0 %v372
        %574 = vmatpush.msra.mxu0 %v370
        %575 = vmatpush.msra.mxu0 %v368
        %576 = vmatpush.msra.mxu0 %v366
        %577 = vmatpush.msra.mxu0 %v364
        %578 = vmatpush.msra.mxu0 %v362
        %579 = vmatpush.msra.mxu0 %v360
        %580 = vmatpush.msra.mxu0 %v358
        %581 = vmatpush.msra.mxu0 %v356
        %582 = vmatmul.f32.gmra.mxu0 %v316
        %v583 = vpop.f32.mrf.mxu0
        %v584 = vadd.f32 %v561, %v583
        %585 = vmatmul.f32.gmra.mxu0 %v320
        %v586 = vpop.f32.mrf.mxu0
        %v587 = vadd.f32 %v564, %v586
        %588 = vdwg.mxu0
        %589 = vmatpush.msra.mxu0 %v418
        %590 = vmatpush.msra.mxu0 %v416
        %591 = vmatpush.msra.mxu0 %v414
        %592 = vmatpush.msra.mxu0 %v412
        %593 = vmatpush.msra.mxu0 %v410
        %594 = vmatpush.msra.mxu0 %v408
        %595 = vmatpush.msra.mxu0 %v406
        %596 = vmatpush.msra.mxu0 %v404
        %597 = vmatpush.msra.mxu0 %v402
        %598 = vmatpush.msra.mxu0 %v400
        %599 = vmatpush.msra.mxu0 %v398
        %600 = vmatpush.msra.mxu0 %v396
        %601 = vmatpush.msra.mxu0 %v394
        %602 = vmatpush.msra.mxu0 %v392
        %603 = vmatpush.msra.mxu0 %v390
        %604 = vmatpush.msra.mxu0 %v388
        %605 = vmatmul.f32.gmra.mxu0 %v317
        %v606 = vpop.f32.mrf.mxu0
        %v607 = vadd.f32 %v584, %v606
        %608 = vmatmul.f32.gmra.mxu0 %v321
        %v609 = vpop.f32.mrf.mxu0
        %v610 = vadd.f32 %v587, %v609
        %611 = vdwg.mxu0
        %612 = vmatpush.msra.mxu0 %v450
        %613 = vmatpush.msra.mxu0 %v448
        %614 = vmatpush.msra.mxu0 %v446
        %615 = vmatpush.msra.mxu0 %v444
        %616 = vmatpush.msra.mxu0 %v442
        %617 = vmatpush.msra.mxu0 %v440
        %618 = vmatpush.msra.mxu0 %v438
        %619 = vmatpush.msra.mxu0 %v436
        %620 = vmatpush.msra.mxu0 %v434
        %621 = vmatpush.msra.mxu0 %v432
        %622 = vmatpush.msra.mxu0 %v430
        %623 = vmatpush.msra.mxu0 %v428
        %624 = vmatpush.msra.mxu0 %v426
        %625 = vmatpush.msra.mxu0 %v424
        %626 = vmatpush.msra.mxu0 %v422
        %627 = vmatpush.msra.mxu0 %v420
        %628 = vmatmul.f32.gmra.mxu0 %v318
        %v629 = vpop.f32.mrf.mxu0
        %v630 = vadd.f32 %v607, %v629
        %631 = vmatmul.f32.gmra.mxu0 %v322
        %v632 = vpop.f32.mrf.mxu0
        %v633 = vadd.f32 %v610, %v632
        %634 = vdwg.mxu0
        %v635 = vadd.f32 %v311, %v538
        %v636 = vadd.f32 %v312, %v630
        %v637 = vadd.f32 %v313, %v541
        %v638 = vadd.f32 %v314, %v633
        %639 = vst [vmem:[#allocation2] sm:$0xff] %v635
        %640 = vst [vmem:[#allocation2 + $0x8] sm:$0xff] %v636
        %641 = vst [vmem:[#allocation2 + $0x10] sm:$0xff] %v637
        %642 = vst [vmem:[#allocation2 + $0x18] sm:$0xff] %v638
        %p643 = scmp.eq.s32.totalorder %s30, 1
        // Predicated region
        $region49: #{tpu_custom_call.1} parent=31 // pred_check
          %p644 = pneg %p643
        $region50: #{tpu_custom_call.1} parent=31 // pred_check_branch
          %646 = sbr.rel (%p644) target = $region52
        $region51: #{tpu_custom_call.1} parent=31 // pred_region
          %v647 = vld [vmem:[#allocation2] sm:$0xff]
          %v648 = vld [vmem:[#allocation2 + $0x8] sm:$0xff]
          %v649 = vld [vmem:[#allocation2 + $0x10] sm:$0xff]
          %v650 = vld [vmem:[#allocation2 + $0x18] sm:$0xff]
          %v651 = vld [vmem:[#allocation10] sm:$0x3]
          %v653 = vperm.slane %v651, 0
          %v654 = vperm.slane %v651, 1
          %v657 = vadd.f32 %v647, %v653
          %v658 = vadd.f32 %v648, %v654
          %v659 = vadd.f32 %v649, %v653
          %v660 = vadd.f32 %v650, %v654
          %661 = vst [vmem:[#allocation11] sm:$0xff] %v657
          %662 = vst [vmem:[#allocation11 + $0x8] sm:$0xff] %v658
          %663 = vst [vmem:[#allocation11 + $0x10] sm:$0xff] %v659
          %664 = vst [vmem:[#allocation11 + $0x18] sm:$0xff] %v660
        $region52: #{tpu_custom_call.1} parent=31 // pred_fallthru
          _
        // Predicated region
        $region53: #{tpu_custom_call.1} parent=31 // pred_check
          %p665 = pneg %p152
        $region54: #{tpu_custom_call.1} parent=31 // pred_check_branch
          %667 = sbr.rel (%p665) target = $region56
        $region55: #{tpu_custom_call.1} parent=31 // pred_region
          %s668 = smul.u32 2, %s28
          %s669 = smul.u32 2, %s29
          %671 = vsyncadd [#allocation7], 0
          %s672 = smul.addr %s668, 2
          %s673 = sadd.s32 %s669, %s672
          %s674 = smul.addr %s673, 8
          %s675 = scalar_lea.hbm %s4, %s674
          %s676 = sshll.u32 [#allocation11], 4
          %s677 = int_to_ptr.vmem [resolvable:$true] %s676
          %s678 = sshll.u32 %s675, 4
          %s679 = int_to_ptr.hbm [resolvable:$true] %s678
          %684 = dma.vmem_to_hbm [thread:$0]  %s677, 512, %s679, [#allocation7], 256, 256, 16
        $region56: #{tpu_custom_call.1} parent=31 // pred_fallthru
          _
        // Predicated region
        $region57: #{tpu_custom_call.1} parent=31 // pred_check
          %p685 = pneg %p152
        $region58: #{tpu_custom_call.1} parent=31 // pred_check_branch
          %687 = sbr.rel (%p685) target = $region60
        $region59: #{tpu_custom_call.1} parent=31 // pred_region
          %689 = dma.done [#allocation7], 512
        $region60: #{tpu_custom_call.1} parent=31 // pred_fallthru
          _
      $region32: #{tpu_custom_call.1} parent=5 // pred_fallthru
        _
      %p690 = scmp.le.s32.totalorder 2, %s18
      // Predicated region
      $region61: #{tpu_custom_call.1} parent=5 // pred_check
        %p691 = pneg %p690
      $region62: #{tpu_custom_call.1} parent=5 // pred_check_branch
        %693 = sbr.rel (%p691) target = $region64
      $region63: #{tpu_custom_call.1} parent=5 // pred_region
        %s694 = ssub.s32 %s18, 2
      $region64: #{tpu_custom_call.1} parent=5 // pred_fallthru
        _
    $region6: #{tpu_custom_call.1} parent=1 // loop_footer
      %s22 = sadd.s32 1, %s18
    $region7: #{tpu_custom_call.1} parent=1 // loop_footer_branch
      %17 = sbr.rel target = $region3
    $region8: #{tpu_custom_call.1} parent=1 // loop_exit
      _
    %695 = vsyncpa [#allocation6], 1
    %s696 = scalar_lea.sflag [#allocation6], 1
    %697 = vsyncpa %s696, 1
    %698 = vsyncpa [#allocation9], 1
    %s699 = scalar_lea.sflag [#allocation9], 1
    %700 = vsyncpa %s699, 1
    %701 = vsyncpa [#allocation7], 1
    %s702 = scalar_lea.sflag [#allocation7], 1
    %703 = vsyncpa %s702, 1

</llo_original>
